<compile_context>
chip_gen: v7x
topology: tpu7x:2x2x1
jax: 0.10.0
libtpu: 0.0.40
codegen_flags: <defaults>
</compile_context>

<pallas_src>
import functools

import jax
import jax.numpy as jnp
from jax.experimental import pallas as pl
from jax.experimental.pallas import tpu as pltpu

# ---- Dreamer "globals", small values for the synthetic test ----
STOCH_VECTOR_SIZE = 16
RECURRENT_VECTOR_SIZE = 16
MLP_SIZE = 32
IN_DIM = STOCH_VECTOR_SIZE + RECURRENT_VECTOR_SIZE  # 32


def _round_up(x, m):
    return ((x + m - 1) // m) * m


def _pick_block_b(batch, requested, mult):
    """Batch-tile size: large (amortize per-step overhead), multiple of the sublane
    packing (8 for f32, 16 for bf16), and capped so the grid keeps >=2 steps for
    v7x's 2 TensorCores when the batch allows it."""
    bb = _round_up(max(mult, min(int(requested), batch)), mult)
    if batch > mult:
        half = _round_up(max(mult, -(-batch // 2)), mult)  # round_up(cdiv(B,2), mult)
        bb = min(bb, half)
    return bb


def _mlp_kernel(x_ref, w1_ref, w2_ref, w3_ref, b_ref, o_ref):
    """3-layer MLP on one [block_b, D] batch tile.

    Weights/biases stay VMEM-resident across grid steps (constant index maps).
    The fc3 result is produced directly as a lane-dense [1, block_b] row.
    """
    x = x_ref[...].astype(jnp.float32)               # [bb, D] (upcast if bf16 input)
    b = b_ref[...]                                   # [3, H] packed biases
    b1 = b[0:1, :]
    b2 = b[1:2, :]
    b3 = b[2:3, 0:1]                                 # fc3 scalar bias

    h1 = jnp.dot(x, w1_ref[...], preferred_element_type=jnp.float32) + b1
    h1 = jnp.maximum(h1, 0.0)
    h2 = jnp.dot(h1, w2_ref[...], preferred_element_type=jnp.float32) + b2
    h2 = jnp.maximum(h2, 0.0)
    # fc3, lane-dense: contract H of w3 row [1, H] with H of h2 [bb, H] -> [1, bb]
    y_row = jnp.einsum("oh,bh->ob", w3_ref[...], h2,
                       preferred_element_type=jnp.float32) + b3
    o_ref[...] = y_row.astype(o_ref.dtype)


@functools.partial(jax.jit, static_argnames=("block_b", "cast_to_bf16"))
def reward_network_forward(hidden_states, params, block_b=1024, cast_to_bf16=False):
    """hidden_states: [..., IN_DIM] float32 -> [..., 1] float32."""
    assert hidden_states.shape[-1] == IN_DIM
    w1, b1, w2, b2, w3, b3 = (params["w1"], params["b1"], params["w2"],
                              params["b2"], params["w3"], params["b3"])
    H = w1.shape[1]

    lead = hidden_states.shape[:-1]
    x = hidden_states.reshape(-1, IN_DIM)
    B = x.shape[0]

    sublane_mult = 16 if cast_to_bf16 else 8
    bb = _pick_block_b(B, block_b, sublane_mult)
    n_blocks = -(-B // bb)
    B_pad = n_blocks * bb

    if cast_to_bf16:
        # Kernel is HBM-bandwidth bound: bf16 halves the input read traffic.
        x = x.astype(jnp.bfloat16)
    if B_pad != B:
        x = jnp.pad(x, ((0, B_pad - B), (0, 0)))     # zero-pad tail block

    # Pack the three biases into a single (3, H) block: rows 0/1 are b1/b2,
    # fc3's scalar bias sits at [2, 0].
    bias = jnp.concatenate([b1, b2, jnp.pad(b3, ((0, 0), (0, H - 1)))], axis=0)
    w3_row = w3.T                                    # [1, H]

    # Very large tiles can exceed v5e's 16 MiB default scoped-VMEM limit.
    vmem_limit = None
    if bb > 4096:
        vmem_limit = min(128 * 1024 * 1024, 8 * bb * 128 * 4)

    out = pl.pallas_call(
        _mlp_kernel,
        out_shape=jax.ShapeDtypeStruct((n_blocks, 1, bb), jnp.float32),
        grid_spec=pltpu.PrefetchScalarGridSpec(
            num_scalar_prefetch=0,
            grid=(n_blocks,),
            in_specs=[
                pl.BlockSpec((bb, IN_DIM), lambda i: (i, 0)),   # x batch tile
                pl.BlockSpec((IN_DIM, H), lambda i: (0, 0)),    # w1 (resident)
                pl.BlockSpec((H, H), lambda i: (0, 0)),         # w2 (resident)
                pl.BlockSpec((1, H), lambda i: (0, 0)),         # w3 row (resident)
                pl.BlockSpec((3, H), lambda i: (0, 0)),         # packed biases
            ],
            # Lane-dense (1, bb) output row per grid step; leading dim squeezed.
            out_specs=pl.BlockSpec((None, 1, bb), lambda i: (i, 0, 0)),
        ),
        compiler_params=pltpu.CompilerParams(
            dimension_semantics=("parallel",),
            vmem_limit_bytes=vmem_limit,
        ),
    )(x, w1, w2, w3_row, bias)

    return out.reshape(-1)[:B].reshape(*lead, 1)


def init_params(key, in_dim=IN_DIM, hidden=MLP_SIZE):
    """Deterministic init mirroring RewardNetwork.weight_init:
    weight ~ N(0, 0.1 * sqrt(2/(fan_in+fan_out))), bias ~ N(0, 0.001 * same)."""
    def layer(k, fan_in, fan_out):
        kw, kb = jax.random.split(k)
        variance = jnp.sqrt(2.0 / (fan_in + fan_out))
        # stored as [in, out] so the kernel computes x @ W
        w = 0.1 * variance * jax.random.normal(kw, (fan_in, fan_out), jnp.float32)
        b = 0.001 * variance * jax.random.normal(kb, (1, fan_out), jnp.float32)
        return w, b

    k1, k2, k3 = jax.random.split(key, 3)
    w1, b1 = layer(k1, in_dim, hidden)
    w2, b2 = layer(k2, hidden, hidden)
    w3, b3 = layer(k3, hidden, 1)
    return {"w1": w1, "b1": b1, "w2": w2, "b2": b2, "w3": w3, "b3": b3}


def reward_network_reference(hidden_states, params):
    x = jnp.maximum(hidden_states @ params["w1"] + params["b1"][0], 0.0)
    x = jnp.maximum(x @ params["w2"] + params["b2"][0], 0.0)
    return x @ params["w3"] + params["b3"][0]


if __name__ == "__main__":
    key = jax.random.PRNGKey(0)
    k_param, k_x = jax.random.split(key)

    params = init_params(k_param)
    # small input: batch=2, seq=4, feature = stoch(16) + recurrent(16) = 32
    hidden_states = jax.random.normal(k_x, (2, 4, IN_DIM), jnp.float32)

    # f32 path: exact semantics of the PyTorch module.
    out = jax.block_until_ready(reward_network_forward(hidden_states, params))
    ref = reward_network_reference(hidden_states, params)
    assert out.shape == (2, 4, 1), out.shape
    assert jnp.allclose(out, ref, atol=1e-5, rtol=1e-5), (
        f"f32 max err {jnp.max(jnp.abs(out - ref))}")

    # bf16-input fast path: compare against a reference with the same input rounding.
    out_bf16 = jax.block_until_ready(
        reward_network_forward(hidden_states, params, cast_to_bf16=True))
    ref_bf16 = reward_network_reference(
        hidden_states.astype(jnp.bfloat16).astype(jnp.float32), params)
    assert out_bf16.shape == (2, 4, 1), out_bf16.shape
    assert jnp.allclose(out_bf16, ref_bf16, atol=5e-5, rtol=1e-3), (
        f"bf16 max err {jnp.max(jnp.abs(out_bf16 - ref_bf16))}")

    print("KERNEL_OK")
</pallas_src>

<mosaic_0001>
module attributes {stable_mosaic.version = 11 : i64} {
  func.func @_mlp_kernel(%arg0: i32, %arg1: memref<8x32xf32, #tpu.memory_space<vmem>>, %arg2: memref<32x32xf32, #tpu.memory_space<vmem>>, %arg3: memref<32x32xf32, #tpu.memory_space<vmem>>, %arg4: memref<1x32xf32, #tpu.memory_space<vmem>>, %arg5: memref<3x32xf32, #tpu.memory_space<vmem>>, %arg6: memref<1x1x8xf32, #tpu.memory_space<vmem>>) attributes {dimension_semantics = [#tpu.dimension_semantics<parallel>], iteration_bounds = array<i64: 1>, scalar_prefetch = 0 : i64, scratch_operands = 0 : i64, tpu.core_type = #tpu.core_type<tc>, window_params = [{transform_indices = @transform_0, window_bounds = array<i64: 8, 32>}, {pipeline_mode = #tpu.pipeline_mode<synchronous>, transform_indices = @transform_1, window_bounds = array<i64: 32, 32>}, {pipeline_mode = #tpu.pipeline_mode<synchronous>, transform_indices = @transform_2, window_bounds = array<i64: 32, 32>}, {pipeline_mode = #tpu.pipeline_mode<synchronous>, transform_indices = @transform_3, window_bounds = array<i64: 1, 32>}, {pipeline_mode = #tpu.pipeline_mode<synchronous>, transform_indices = @transform_4, window_bounds = array<i64: 3, 32>}, {transform_indices = @transform_5, window_bounds = array<i64: 1, 1, 8>}]} {
    %c0 = arith.constant 0 : index
    %c0_0 = arith.constant 0 : index
    %0 = vector.load %arg1[%c0, %c0_0] : memref<8x32xf32, #tpu.memory_space<vmem>>, vector<8x32xf32>
    %c0_1 = arith.constant 0 : index
    %c0_2 = arith.constant 0 : index
    %1 = vector.load %arg5[%c0_1, %c0_2] : memref<3x32xf32, #tpu.memory_space<vmem>>, vector<3x32xf32>
    %2 = vector.extract_strided_slice %1 {offsets = [0, 0], sizes = [1, 32], strides = [1, 1]} : vector<3x32xf32> to vector<1x32xf32>
    %3 = vector.extract_strided_slice %1 {offsets = [1, 0], sizes = [1, 32], strides = [1, 1]} : vector<3x32xf32> to vector<1x32xf32>
    %4 = vector.extract_strided_slice %1 {offsets = [2, 0], sizes = [1, 1], strides = [1, 1]} : vector<3x32xf32> to vector<1x1xf32>
    %c0_3 = arith.constant 0 : index
    %c0_4 = arith.constant 0 : index
    %5 = vector.load %arg2[%c0_3, %c0_4] : memref<32x32xf32, #tpu.memory_space<vmem>>, vector<32x32xf32>
    %cst = arith.constant dense<0.000000e+00> : vector<8x32xf32>
    %6 = tpu.matmul %0, %5, %cst {dimension_numbers = #tpu.dot_dimension_numbers<[1], [0], [0], [1], [0, 0, 1, 1], [], []>} : vector<8x32xf32>, vector<32x32xf32>, vector<8x32xf32> -> vector<8x32xf32>
    %7 = vector.broadcast %2 : vector<1x32xf32> to vector<8x32xf32>
    %8 = arith.addf %6, %7 : vector<8x32xf32>
    %cst_5 = arith.constant 0.000000e+00 : f32
    %9 = vector.broadcast %cst_5 : f32 to vector<8x32xf32>
    %10 = arith.maximumf %8, %9 : vector<8x32xf32>
    %c0_6 = arith.constant 0 : index
    %c0_7 = arith.constant 0 : index
    %11 = vector.load %arg3[%c0_6, %c0_7] : memref<32x32xf32, #tpu.memory_space<vmem>>, vector<32x32xf32>
    %cst_8 = arith.constant dense<0.000000e+00> : vector<8x32xf32>
    %12 = tpu.matmul %10, %11, %cst_8 {dimension_numbers = #tpu.dot_dimension_numbers<[1], [0], [0], [1], [0, 0, 1, 1], [], []>} : vector<8x32xf32>, vector<32x32xf32>, vector<8x32xf32> -> vector<8x32xf32>
    %13 = vector.broadcast %3 : vector<1x32xf32> to vector<8x32xf32>
    %14 = arith.addf %12, %13 : vector<8x32xf32>
    %cst_9 = arith.constant 0.000000e+00 : f32
    %15 = vector.broadcast %cst_9 : f32 to vector<8x32xf32>
    %16 = arith.maximumf %14, %15 : vector<8x32xf32>
    %c0_10 = arith.constant 0 : index
    %c0_11 = arith.constant 0 : index
    %17 = vector.load %arg4[%c0_10, %c0_11] : memref<1x32xf32, #tpu.memory_space<vmem>>, vector<1x32xf32>
    "tpu.trace_start"() <{level = 10 : i32, message = "oh,bh->ob"}> : () -> ()
    %cst_12 = arith.constant dense<0.000000e+00> : vector<1x8xf32>
    %18 = tpu.matmul %17, %16, %cst_12 {dimension_numbers = #tpu.dot_dimension_numbers<[1], [1], [0], [0], [0, 0, 1, 0], [], []>} : vector<1x32xf32>, vector<8x32xf32>, vector<1x8xf32> -> vector<1x8xf32>
    "tpu.trace_stop"() : () -> ()
    %19 = vector.broadcast %4 : vector<1x1xf32> to vector<1x8xf32>
    %20 = arith.addf %18, %19 : vector<1x8xf32>
    %c0_13 = arith.constant 0 : index
    %c0_14 = arith.constant 0 : index
    %c0_15 = arith.constant 0 : index
    %21 = vector.load %arg6[%c0_13, %c0_14, %c0_15] : memref<1x1x8xf32, #tpu.memory_space<vmem>>, vector<1x1x8xf32>
    %22 = vector.shape_cast %21 : vector<1x1x8xf32> to vector<1x8xf32>
    %23 = vector.shape_cast %20 : vector<1x8xf32> to vector<1x1x8xf32>
    tpu.vector_store %arg6[%c0_13, %c0_14, %c0_15], %23 {strides = array<i32>} : memref<1x1x8xf32, #tpu.memory_space<vmem>>, vector<1x1x8xf32>,
    return
  }
  func.func @transform_0(%arg0: i32) -> (i32, i32) {
    %c0_i32 = arith.constant 0 : i32
    %c0_i32_0 = arith.constant 0 : i32
    return %arg0, %c0_i32 : i32, i32
  }
  func.func @transform_1(%arg0: i32) -> (i32, i32) {
    %c0_i32 = arith.constant 0 : i32
    %c0_i32_0 = arith.constant 0 : i32
    %c0_i32_1 = arith.constant 0 : i32
    return %c0_i32, %c0_i32_0 : i32, i32
  }
  func.func @transform_2(%arg0: i32) -> (i32, i32) {
    %c0_i32 = arith.constant 0 : i32
    %c0_i32_0 = arith.constant 0 : i32
    %c0_i32_1 = arith.constant 0 : i32
    return %c0_i32, %c0_i32_0 : i32, i32
  }
  func.func @transform_3(%arg0: i32) -> (i32, i32) {
    %c0_i32 = arith.constant 0 : i32
    %c0_i32_0 = arith.constant 0 : i32
    %c0_i32_1 = arith.constant 0 : i32
    return %c0_i32, %c0_i32_0 : i32, i32
  }
  func.func @transform_4(%arg0: i32) -> (i32, i32) {
    %c0_i32 = arith.constant 0 : i32
    %c0_i32_0 = arith.constant 0 : i32
    %c0_i32_1 = arith.constant 0 : i32
    return %c0_i32, %c0_i32_0 : i32, i32
  }
  func.func @transform_5(%arg0: i32) -> (i32, i32, i32) {
    %c0_i32 = arith.constant 0 : i32
    %c0_i32_0 = arith.constant 0 : i32
    %c0_i32_1 = arith.constant 0 : i32
    return %arg0, %c0_i32, %c0_i32_0 : i32, i32, i32
  }
}

</mosaic_0001>

<llo_original>
// kernel: reward_network_forward.1
$region0: #{reward_network_forward.1}
  #allocation0 [shape = 'u32[]', space=smem, size = 0x4, offset = 0x4, fixed_abs, tag = 'smem constant byte address 0x4 - core index']
  #allocation1 [shape = 'u32[144,128]{1,0:T(1,128)}', space=vmem, size = 0x12000, scoped, tag = 'internal scratch']
  %s0 = inlined_call_operand.vmem [shape: f32[8,32], index: 0, kind: input, shape index: {}]
  %s1 = inlined_call_operand.hbm [shape: f32[32,32], index: 1, kind: input, shape index: {}]
  %s2 = inlined_call_operand.hbm [shape: f32[32,32], index: 2, kind: input, shape index: {}]
  %s3 = inlined_call_operand.vmem [shape: f32[1,32], index: 3, kind: input, shape index: {}]
  %s4 = inlined_call_operand.vmem [shape: f32[3,32], index: 4, kind: input, shape index: {}]
  %s5 = inlined_call_operand.vmem [shape: f32[1,1,8], index: 5, kind: output, shape index: {}]
  %s6 = sld [smem:[#allocation0]]
  $region38: #{reward_network_forward.1} parent=0
    _
  %s8 = ssub.s32 1, %s6
  %s9 = scalar_select 0, %s8, %s6
  $region1: #{reward_network_forward.1} parent=0
    #allocation2 [shape = 'u8[16384]{0}', space=vmem, size = 0x4000, scoped, tag = 'input window, operand 1, single buffered']
    #allocation3 [shape = 's32[1]{0}', space=sflag, size = 0x4, scoped, tag = 'scoped memory for reward_network_forward.1']
    #allocation4 [shape = 'u8[16384]{0}', space=vmem, size = 0x4000, scoped, tag = 'input window, operand 2, single buffered']
    #allocation5 [shape = 's32[1]{0}', space=sflag, size = 0x4, scoped, tag = 'scoped memory for reward_network_forward.1']
    %10 = vsyncpa [#allocation3], 0
    %11 = vsyncpa [#allocation5], 0
    // Predicated region
    $region2: #{reward_network_forward.1} parent=1 // pred_check
      _
    $region3: #{reward_network_forward.1} parent=1 // pred_check_branch
      %13 = sbr.rel (0) target = $region5
    $region4: #{reward_network_forward.1} parent=1 // pred_region
      _
    $region5: #{reward_network_forward.1} parent=1 // pred_fallthru
      _
    // Predicated region
    $region6: #{reward_network_forward.1} parent=1 // pred_check
      _
    $region7: #{reward_network_forward.1} parent=1 // pred_check_branch
      %15 = sbr.rel (0) target = $region9
    $region8: #{reward_network_forward.1} parent=1 // pred_region
      %s17 = ssub.s32 512, 512
      %18 = vsyncadd [#allocation3], %s17
      %s19 = sshll.u32 [#allocation2], 4
      %s20 = int_to_ptr.vmem [resolvable:$true] %s19
      %25 = dma.hbm_to_vmem [thread:$0]  %s1, 512, %s20, [#allocation3], 128, 128, 8
    $region9: #{reward_network_forward.1} parent=1 // pred_fallthru
      _
    // Predicated region
    $region10: #{reward_network_forward.1} parent=1 // pred_check
      _
    $region11: #{reward_network_forward.1} parent=1 // pred_check_branch
      %27 = sbr.rel (0) target = $region13
    $region12: #{reward_network_forward.1} parent=1 // pred_region
      %s29 = ssub.s32 512, 512
      %30 = vsyncadd [#allocation5], %s29
      %s31 = sshll.u32 [#allocation4], 4
      %s32 = int_to_ptr.vmem [resolvable:$true] %s31
      %37 = dma.hbm_to_vmem [thread:$0]  %s2, 512, %s32, [#allocation5], 128, 128, 8
    $region13: #{reward_network_forward.1} parent=1 // pred_fallthru
      _
    // Predicated region
    $region14: #{reward_network_forward.1} parent=1 // pred_check
      _
    $region15: #{reward_network_forward.1} parent=1 // pred_check_branch
      %39 = sbr.rel (0) target = $region17
    $region16: #{reward_network_forward.1} parent=1 // pred_region
      _
    $region17: #{reward_network_forward.1} parent=1 // pred_fallthru
      _
    // Predicated region
    $region18: #{reward_network_forward.1} parent=1 // pred_check
      _
    $region19: #{reward_network_forward.1} parent=1 // pred_check_branch
      %41 = sbr.rel (0) target = $region21
    $region20: #{reward_network_forward.1} parent=1 // pred_region
      _
    $region21: #{reward_network_forward.1} parent=1 // pred_fallthru
      _
    // Predicated region
    $region22: #{reward_network_forward.1} parent=1 // pred_check
      _
    $region23: #{reward_network_forward.1} parent=1 // pred_check_branch
      %43 = sbr.rel (0) target = $region25
    $region24: #{reward_network_forward.1} parent=1 // pred_region
      %44 = dma.done [#allocation3], 512
    $region25: #{reward_network_forward.1} parent=1 // pred_fallthru
      _
    // Predicated region
    $region26: #{reward_network_forward.1} parent=1 // pred_check
      _
    $region27: #{reward_network_forward.1} parent=1 // pred_check_branch
      %46 = sbr.rel (0) target = $region29
    $region28: #{reward_network_forward.1} parent=1 // pred_region
      %47 = dma.done [#allocation5], 512
    $region29: #{reward_network_forward.1} parent=1 // pred_fallthru
      _
    %v48 = vld [vmem:[%s0] sm:$0xff]
    %v49 = vld [vmem:[%s4] sm:$0x7]
    %v50 = vld [vmem:[#allocation2] sm:$0xff]
    %v51 = vld [vmem:[#allocation2 + $0x8] sm:$0xff]
    %v52 = vld [vmem:[#allocation2 + $0x10] sm:$0xff]
    %v53 = vld [vmem:[#allocation2 + $0x18] sm:$0xff]
    %v54 = vlaneseq
    %v55 = vshrl.u32 %v54, 7
    %v56 = vsub.s32 0, %v55
    %v57 = vrot.slane %v49, %v56
    %vm58 = vcmask 261120
    %v60 = vsel %vm58, %v48, 0
    %62 = vmatprep.subr.mxu0 0.0
    %63 = vmatpush1.msra.mxu0 %v50
    %64 = vmatprep.subr.mxu0 0.0
    %65 = vmatpush1.msra.mxu0 %v51
    %66 = vmatprep.subr.mxu0 0.0
    %67 = vmatpush1.msra.mxu0 %v52
    %68 = vmatprep.subr.mxu0 0.0
    %69 = vmatpush1.msra.mxu0 %v53
    %70 = vmatprep.subr.mxu0 0.0
    %71 = vmatpush1.msra.mxu0 0.0
    %72 = vmatprep.subr.mxu0 0.0
    %73 = vmatpush1.msra.mxu0 0.0
    %74 = vmatprep.subr.mxu0 0.0
    %75 = vmatpush1.msra.mxu0 0.0
    %76 = vmatprep.subr.mxu0 0.0
    %77 = vmatpush1.msra.mxu0 0.0
    %78 = vmatprep.subr.mxu0 0.0
    %79 = vmatpush1.msra.mxu0 0.0
    %80 = vmatprep.subr.mxu0 0.0
    %81 = vmatpush1.msra.mxu0 0.0
    %82 = vmatprep.subr.mxu0 0.0
    %83 = vmatpush1.msra.mxu0 0.0
    %84 = vmatprep.subr.mxu0 0.0
    %85 = vmatpush1.msra.mxu0 0.0
    %86 = vmatprep.subr.mxu0 0.0
    %87 = vmatpush1.msra.mxu0 0.0
    %88 = vmatprep.subr.mxu0 0.0
    %89 = vmatpush1.msra.mxu0 0.0
    %90 = vmatprep.subr.mxu0 0.0
    %91 = vmatpush1.msra.mxu0 0.0
    %92 = vmatprep.subr.mxu0 0.0
    %93 = vmatpush1.msra.mxu0 0.0
    %94 = vmatprep.subr.mxu0 0.0
    %95 = vmatpush1.msra.mxu0 0.0
    %96 = vmatprep.subr.mxu0 0.0
    %97 = vmatpush1.msra.mxu0 0.0
    %98 = vmatprep.subr.mxu0 0.0
    %99 = vmatpush1.msra.mxu0 0.0
    %100 = vmatprep.subr.mxu0 0.0
    %101 = vmatpush1.msra.mxu0 0.0
    %102 = vmatprep.subr.mxu0 0.0
    %103 = vmatpush1.msra.mxu0 0.0
    %104 = vmatprep.subr.mxu0 0.0
    %105 = vmatpush1.msra.mxu0 0.0
    %106 = vmatprep.subr.mxu0 0.0
    %107 = vmatpush1.msra.mxu0 0.0
    %108 = vmatprep.subr.mxu0 0.0
    %109 = vmatpush1.msra.mxu0 0.0
    %110 = vmatprep.subr.mxu0 0.0
    %111 = vmatpush1.msra.mxu0 0.0
    %112 = vmatprep.subr.mxu0 0.0
    %113 = vmatpush1.msra.mxu0 0.0
    %114 = vmatprep.subr.mxu0 0.0
    %115 = vmatpush1.msra.mxu0 0.0
    %116 = vmatprep.subr.mxu0 0.0
    %117 = vmatpush1.msra.mxu0 0.0
    %118 = vmatprep.subr.mxu0 0.0
    %119 = vmatpush1.msra.mxu0 0.0
    %120 = vmatprep.subr.mxu0 0.0
    %121 = vmatpush1.msra.mxu0 0.0
    %122 = vmatprep.subr.mxu0 0.0
    %123 = vmatpush1.msra.mxu0 0.0
    %124 = vmatprep.subr.mxu0 0.0
    %125 = vmatpush1.msra.mxu0 0.0
    %126 = vmatprep.mubr.f32.mxu0 0.0
    %127 = vmatmul.mubr.f32.gmra.mrb[0].mxu0 %v60
    %v128 = vpop.f32.mrb[0].mxu0
    %v129 = vadd.f32 %v57, %v128
    %v130 = vpop.f32.mrb[0].mxu0
    %131 = vdwg.mxu0
    %v132 = vmax.f32 %v129, 0.0
    %v133 = vld [vmem:[#allocation4] sm:$0xff]
    %v134 = vld [vmem:[#allocation4 + $0x8] sm:$0xff]
    %v135 = vld [vmem:[#allocation4 + $0x10] sm:$0xff]
    %v136 = vld [vmem:[#allocation4 + $0x18] sm:$0xff]
    %v137 = vlaneseq
    %v138 = vshrl.u32 %v137, 7
    %v139 = vsub.s32 1, %v138
    %v140 = vrot.slane %v49, %v139
    %v142 = vsel %vm58, %v132, 0
    %144 = vmatprep.subr.mxu0 0.0
    %145 = vmatpush1.msra.mxu0 %v133
    %146 = vmatprep.subr.mxu0 0.0
    %147 = vmatpush1.msra.mxu0 %v134
    %148 = vmatprep.subr.mxu0 0.0
    %149 = vmatpush1.msra.mxu0 %v135
    %150 = vmatprep.subr.mxu0 0.0
    %151 = vmatpush1.msra.mxu0 %v136
    %152 = vmatprep.subr.mxu0 0.0
    %153 = vmatpush1.msra.mxu0 0.0
    %154 = vmatprep.subr.mxu0 0.0
    %155 = vmatpush1.msra.mxu0 0.0
    %156 = vmatprep.subr.mxu0 0.0
    %157 = vmatpush1.msra.mxu0 0.0
    %158 = vmatprep.subr.mxu0 0.0
    %159 = vmatpush1.msra.mxu0 0.0
    %160 = vmatprep.subr.mxu0 0.0
    %161 = vmatpush1.msra.mxu0 0.0
    %162 = vmatprep.subr.mxu0 0.0
    %163 = vmatpush1.msra.mxu0 0.0
    %164 = vmatprep.subr.mxu0 0.0
    %165 = vmatpush1.msra.mxu0 0.0
    %166 = vmatprep.subr.mxu0 0.0
    %167 = vmatpush1.msra.mxu0 0.0
    %168 = vmatprep.subr.mxu0 0.0
    %169 = vmatpush1.msra.mxu0 0.0
    %170 = vmatprep.subr.mxu0 0.0
    %171 = vmatpush1.msra.mxu0 0.0
    %172 = vmatprep.subr.mxu0 0.0
    %173 = vmatpush1.msra.mxu0 0.0
    %174 = vmatprep.subr.mxu0 0.0
    %175 = vmatpush1.msra.mxu0 0.0
    %176 = vmatprep.subr.mxu0 0.0
    %177 = vmatpush1.msra.mxu0 0.0
    %178 = vmatprep.subr.mxu0 0.0
    %179 = vmatpush1.msra.mxu0 0.0
    %180 = vmatprep.subr.mxu0 0.0
    %181 = vmatpush1.msra.mxu0 0.0
    %182 = vmatprep.subr.mxu0 0.0
    %183 = vmatpush1.msra.mxu0 0.0
    %184 = vmatprep.subr.mxu0 0.0
    %185 = vmatpush1.msra.mxu0 0.0
    %186 = vmatprep.subr.mxu0 0.0
    %187 = vmatpush1.msra.mxu0 0.0
    %188 = vmatprep.subr.mxu0 0.0
    %189 = vmatpush1.msra.mxu0 0.0
    %190 = vmatprep.subr.mxu0 0.0
    %191 = vmatpush1.msra.mxu0 0.0
    %192 = vmatprep.subr.mxu0 0.0
    %193 = vmatpush1.msra.mxu0 0.0
    %194 = vmatprep.subr.mxu0 0.0
    %195 = vmatpush1.msra.mxu0 0.0
    %196 = vmatprep.subr.mxu0 0.0
    %197 = vmatpush1.msra.mxu0 0.0
    %198 = vmatprep.subr.mxu0 0.0
    %199 = vmatpush1.msra.mxu0 0.0
    %200 = vmatprep.subr.mxu0 0.0
    %201 = vmatpush1.msra.mxu0 0.0
    %202 = vmatprep.subr.mxu0 0.0
    %203 = vmatpush1.msra.mxu0 0.0
    %204 = vmatprep.subr.mxu0 0.0
    %205 = vmatpush1.msra.mxu0 0.0
    %206 = vmatprep.subr.mxu0 0.0
    %207 = vmatpush1.msra.mxu0 0.0
    %208 = vmatprep.mubr.f32.mxu0 0.0
    %209 = vmatmul.mubr.f32.gmra.mrb[0].mxu0 %v142
    %v210 = vpop.f32.mrb[0].mxu0
    %v211 = vadd.f32 %v140, %v210
    %v212 = vpop.f32.mrb[0].mxu0
    %213 = vdwg.mxu0
    %v214 = vmax.f32 %v211, 0.0
    %v215 = vld [vmem:[%s3] sm:$0x1]
    %217 = vset.pattern.permute.xlu0 0
    %218 = vperm.xlu0 %217, %v49
    %v219 = vpop.permute.xlu0 %218
    %v220 = vrot.slane %v219, 2
    %v223 = vsel %vm58, %v215, 0
    %v226 = vsel %vm58, %v214, 0
    %228 = vmatprep.subr.mxu0 0.0
    %229 = vmatpush1.xpose.msra.mxu0 %v226
    %230 = vmatprep.subr.mxu0 0.0
    %231 = vmatpush1.xpose.msra.mxu0 0.0
    %232 = vmatprep.subr.mxu0 0.0
    %233 = vmatpush1.xpose.msra.mxu0 0.0
    %234 = vmatprep.subr.mxu0 0.0
    %235 = vmatpush1.xpose.msra.mxu0 0.0
    %236 = vmatprep.subr.mxu0 0.0
    %237 = vmatpush1.xpose.msra.mxu0 0.0
    %238 = vmatprep.subr.mxu0 0.0
    %239 = vmatpush1.xpose.msra.mxu0 0.0
    %240 = vmatprep.subr.mxu0 0.0
    %241 = vmatpush1.xpose.msra.mxu0 0.0
    %242 = vmatprep.subr.mxu0 0.0
    %243 = vmatpush1.xpose.msra.mxu0 0.0
    %244 = vmatprep.subr.mxu0 0.0
    %245 = vmatpush1.xpose.msra.mxu0 0.0
    %246 = vmatprep.subr.mxu0 0.0
    %247 = vmatpush1.xpose.msra.mxu0 0.0
    %248 = vmatprep.subr.mxu0 0.0
    %249 = vmatpush1.xpose.msra.mxu0 0.0
    %250 = vmatprep.subr.mxu0 0.0
    %251 = vmatpush1.xpose.msra.mxu0 0.0
    %252 = vmatprep.subr.mxu0 0.0
    %253 = vmatpush1.xpose.msra.mxu0 0.0
    %254 = vmatprep.subr.mxu0 0.0
    %255 = vmatpush1.xpose.msra.mxu0 0.0
    %256 = vmatprep.subr.mxu0 0.0
    %257 = vmatpush1.xpose.msra.mxu0 0.0
    %258 = vmatprep.subr.mxu0 0.0
    %259 = vmatpush1.xpose.msra.mxu0 0.0
    %260 = vmatprep.subr.mxu0 0.0
    %261 = vmatpush1.xpose.msra.mxu0 0.0
    %262 = vmatprep.subr.mxu0 0.0
    %263 = vmatpush1.xpose.msra.mxu0 0.0
    %264 = vmatprep.subr.mxu0 0.0
    %265 = vmatpush1.xpose.msra.mxu0 0.0
    %266 = vmatprep.subr.mxu0 0.0
    %267 = vmatpush1.xpose.msra.mxu0 0.0
    %268 = vmatprep.subr.mxu0 0.0
    %269 = vmatpush1.xpose.msra.mxu0 0.0
    %270 = vmatprep.subr.mxu0 0.0
    %271 = vmatpush1.xpose.msra.mxu0 0.0
    %272 = vmatprep.subr.mxu0 0.0
    %273 = vmatpush1.xpose.msra.mxu0 0.0
    %274 = vmatprep.subr.mxu0 0.0
    %275 = vmatpush1.xpose.msra.mxu0 0.0
    %276 = vmatprep.subr.mxu0 0.0
    %277 = vmatpush1.xpose.msra.mxu0 0.0
    %278 = vmatprep.subr.mxu0 0.0
    %279 = vmatpush1.xpose.msra.mxu0 0.0
    %280 = vmatprep.subr.mxu0 0.0
    %281 = vmatpush1.xpose.msra.mxu0 0.0
    %282 = vmatprep.subr.mxu0 0.0
    %283 = vmatpush1.xpose.msra.mxu0 0.0
    %284 = vmatprep.subr.mxu0 0.0
    %285 = vmatpush1.xpose.msra.mxu0 0.0
    %286 = vmatprep.subr.mxu0 0.0
    %287 = vmatpush1.xpose.msra.mxu0 0.0
    %288 = vmatprep.subr.mxu0 0.0
    %289 = vmatpush1.xpose.msra.mxu0 0.0
    %290 = vmatprep.subr.mxu0 0.0
    %291 = vmatpush1.xpose.msra.mxu0 0.0
    %292 = vmatprep.mubr.f32.mxu0 0.0
    %293 = vmatmul.mubr.f32.gmra.mrb[0].mxu0 %v223
    %v294 = vpop.f32.mrb[0].mxu0
    %v295 = vadd.f32 %v220, %v294
    %v296 = vpop.f32.mrb[0].mxu0
    %297 = vdwg.mxu0
    %vm298 = vcmask 57344
    %299 = vst.msk [vmem:[%s5] sm:$0x1] %vm298, %v295
    // Predicated region
    $region30: #{reward_network_forward.1} parent=1 // pred_check
      _
    $region31: #{reward_network_forward.1} parent=1 // pred_check_branch
      %301 = sbr.rel (0) target = $region33
    $region32: #{reward_network_forward.1} parent=1 // pred_region
      _
    $region33: #{reward_network_forward.1} parent=1 // pred_fallthru
      _
    // Predicated region
    $region34: #{reward_network_forward.1} parent=1 // pred_check
      _
    $region35: #{reward_network_forward.1} parent=1 // pred_check_branch
      %303 = sbr.rel (0) target = $region37
    $region36: #{reward_network_forward.1} parent=1 // pred_region
      _
    $region37: #{reward_network_forward.1} parent=1 // pred_fallthru
      _
    %304 = vsyncpa [#allocation3], 1
    %305 = vsyncpa [#allocation5], 1

</llo_original>
